<compile_context>
chip_gen: v7x
topology: tpu7x:2x2x1
jax: 0.10.0
libtpu: 0.0.40
codegen_flags: <defaults>
</compile_context>

<pallas_src>
from functools import partial

import jax
import jax.numpy as jnp
from jax.experimental import pallas as pl
from jax.experimental.pallas import tpu as pltpu


def _patch_proj_kernel(x_ref, w_ref, b_ref, o_ref):
    # x_ref: (TM, K) patches, w_ref: (TN, K) projection rows, b_ref: (1, TN) bias.
    # Contract trailing K of both operands (x @ w.T) -> (TM, TN), f32 accumulate.
    acc = jax.lax.dot_general(
        x_ref[...], w_ref[...],
        dimension_numbers=(((1,), (1,)), ((), ())),
        preferred_element_type=jnp.float32)
    o_ref[...] = (acc + b_ref[...]).astype(o_ref.dtype)


def _round_up(x, m):
    return ((x + m - 1) // m) * m


@partial(jax.jit, static_argnames=("patch_size", "compute_dtype"))
def patch_embed(x, weight, bias, *, patch_size, compute_dtype=None):
    """x: (B, C, H, W) NCHW.  weight: (embed_dim, C, p, p) (PyTorch OIHW).
    bias: (embed_dim,).  Returns (B, H//p, W//p, embed_dim)."""
    B, C, H, W = x.shape
    p = patch_size
    assert H % p == 0 and W % p == 0
    nH, nW = H // p, W // p
    N = weight.shape[0]
    K = C * p * p
    M = B * nH * nW

    if compute_dtype is None:
        compute_dtype = x.dtype
    out_dtype = x.dtype

    # --- patch extraction (inside the jit: fused with the pallas_call feed) ---
    # (B, C, nH, p, nW, p) -> (B, nH, nW, C, p, p) -> (M, K)
    patches = x.reshape(B, C, nH, p, nW, p).transpose(0, 2, 4, 1, 3, 5)
    patches = patches.reshape(M, K).astype(compute_dtype)

    # Conv weight OIHW -> (N, K): reshape only, no transpose (kernel does trans_b).
    w = weight.reshape(N, K).astype(compute_dtype)
    b = bias.astype(jnp.float32)

    # --- tile sizes: MXU-aligned, VMEM-budget friendly across v5e/v6e/v7x ---
    TM, TN = 512, 256
    if M >= TM:
        M_pad = _round_up(M, TM)
    else:
        M_pad = _round_up(M, 8)
        TM = M_pad
    if N >= TN:
        N_pad = _round_up(N, TN)
    else:
        N_pad = _round_up(N, 128)   # lane-dense output stores
        TN = N_pad

    if M_pad != M:
        patches = jnp.pad(patches, ((0, M_pad - M), (0, 0)))
    if N_pad != N:
        w = jnp.pad(w, ((0, N_pad - N), (0, 0)))
        b = jnp.pad(b, (0, N_pad - N))
    b = b.reshape(1, N_pad)

    num_m = M_pad // TM
    num_n = N_pad // TN

    cdt_bytes = jnp.dtype(compute_dtype).itemsize
    cost = pl.CostEstimate(
        flops=2 * M_pad * K * N_pad,
        transcendentals=0,
        bytes_accessed=(M_pad * K + N_pad * K) * cdt_bytes
        + M_pad * N_pad * jnp.dtype(out_dtype).itemsize,
    )

    # Grid: N-tiles outer, M-tiles inner -> the (TN, K) weight tile is resident
    # across the whole inner M sweep (its block index is constant there, so
    # Pallas skips the re-DMA); patches stream through double-buffered tiles.
    out = pl.pallas_call(
        _patch_proj_kernel,
        out_shape=jax.ShapeDtypeStruct((M_pad, N_pad), out_dtype),
        grid_spec=pltpu.PrefetchScalarGridSpec(
            num_scalar_prefetch=0,
            grid=(num_n, num_m),
            in_specs=[
                pl.BlockSpec((TM, K), lambda j, i: (i, 0)),   # patches
                pl.BlockSpec((TN, K), lambda j, i: (j, 0)),   # weight (trans_b)
                pl.BlockSpec((1, TN), lambda j, i: (0, j)),   # bias
            ],
            out_specs=pl.BlockSpec((TM, TN), lambda j, i: (i, j)),
        ),
        compiler_params=pltpu.CompilerParams(
            dimension_semantics=("parallel", "parallel")),
        cost_estimate=cost,
    )(patches, w, b)

    # Strip padding; (B*nH*nW, embed_dim) -> (B, nH, nW, embed_dim)
    # == Conv2d(...).permute(0, 2, 3, 1).
    out = out[:M, :N]
    return out.reshape(B, nH, nW, N)


if __name__ == "__main__":
    # Small shapes consistent with the module: img_size=16, patch_size=4,
    # in_chans=4, embed_dim=32, batch=2.
    B, C, H, W = 2, 4, 16, 16
    p = 4
    embed_dim = 32

    key = jax.random.PRNGKey(0)
    kx, kw, kb = jax.random.split(key, 3)
    x = jax.random.normal(kx, (B, C, H, W), dtype=jnp.float32)
    # Deterministic synthetic conv parameters (PyTorch layout: OIHW).
    weight = jax.random.normal(kw, (embed_dim, C, p, p), dtype=jnp.float32) * 0.02
    bias = jax.random.normal(kb, (embed_dim,), dtype=jnp.float32) * 0.02

    # Pure-JAX reference (strided conv + permute), as in the PyTorch module.
    ref = jax.lax.conv_general_dilated(
        x, weight, window_strides=(p, p), padding="VALID",
        dimension_numbers=("NCHW", "OIHW", "NCHW"))
    ref = (ref + bias[None, :, None, None]).transpose(0, 2, 3, 1)

    # f32 compute path.
    out = patch_embed(x, weight, bias, patch_size=p)
    out = jax.block_until_ready(out)
    assert out.shape == (B, H // p, W // p, embed_dim)
    assert jnp.allclose(out, ref, atol=1e-4, rtol=1e-4)

    # bf16 compute path (f32 accumulation) -- looser tolerance.
    out_bf16 = patch_embed(x, weight, bias, patch_size=p,
                           compute_dtype=jnp.bfloat16)
    out_bf16 = jax.block_until_ready(out_bf16)
    assert jnp.allclose(out_bf16, ref, atol=3e-2, rtol=3e-2)

    print("KERNEL_OK")
</pallas_src>

<mosaic_0001>
module attributes {stable_mosaic.version = 11 : i64} {
  func.func @_patch_proj_kernel(%arg0: i32, %arg1: i32, %arg2: memref<32x64xf32, #tpu.memory_space<vmem>>, %arg3: memref<128x64xf32, #tpu.memory_space<vmem>>, %arg4: memref<1x128xf32, #tpu.memory_space<vmem>>, %arg5: memref<32x128xf32, #tpu.memory_space<vmem>>) attributes {dimension_semantics = [#tpu.dimension_semantics<parallel>, #tpu.dimension_semantics<parallel>], iteration_bounds = array<i64: 1, 1>, scalar_prefetch = 0 : i64, scratch_operands = 0 : i64, tpu.core_type = #tpu.core_type<tc>, window_params = [{transform_indices = @transform_0, window_bounds = array<i64: 32, 64>}, {transform_indices = @transform_1, window_bounds = array<i64: 128, 64>}, {transform_indices = @transform_2, window_bounds = array<i64: 1, 128>}, {transform_indices = @transform_3, window_bounds = array<i64: 32, 128>}]} {
    %c0 = arith.constant 0 : index
    %c0_0 = arith.constant 0 : index
    %0 = vector.load %arg2[%c0, %c0_0] : memref<32x64xf32, #tpu.memory_space<vmem>>, vector<32x64xf32>
    %c0_1 = arith.constant 0 : index
    %c0_2 = arith.constant 0 : index
    %1 = vector.load %arg3[%c0_1, %c0_2] : memref<128x64xf32, #tpu.memory_space<vmem>>, vector<128x64xf32>
    %cst = arith.constant dense<0.000000e+00> : vector<32x128xf32>
    %2 = tpu.matmul %0, %1, %cst {dimension_numbers = #tpu.dot_dimension_numbers<[1], [1], [0], [0], [0, 0, 1, 0], [], []>} : vector<32x64xf32>, vector<128x64xf32>, vector<32x128xf32> -> vector<32x128xf32>
    %c0_3 = arith.constant 0 : index
    %c0_4 = arith.constant 0 : index
    %3 = vector.load %arg4[%c0_3, %c0_4] : memref<1x128xf32, #tpu.memory_space<vmem>>, vector<1x128xf32>
    %4 = vector.broadcast %3 : vector<1x128xf32> to vector<32x128xf32>
    %5 = arith.addf %2, %4 : vector<32x128xf32>
    %c0_5 = arith.constant 0 : index
    %c0_6 = arith.constant 0 : index
    %6 = vector.load %arg5[%c0_5, %c0_6] : memref<32x128xf32, #tpu.memory_space<vmem>>, vector<32x128xf32>
    tpu.vector_store %arg5[%c0_5, %c0_6], %5 {strides = array<i32>} : memref<32x128xf32, #tpu.memory_space<vmem>>, vector<32x128xf32>,
    return
  }
  func.func @transform_0(%arg0: i32, %arg1: i32) -> (i32, i32) {
    %c0_i32 = arith.constant 0 : i32
    %c0_i32_0 = arith.constant 0 : i32
    return %arg1, %c0_i32 : i32, i32
  }
  func.func @transform_1(%arg0: i32, %arg1: i32) -> (i32, i32) {
    %c0_i32 = arith.constant 0 : i32
    %c0_i32_0 = arith.constant 0 : i32
    return %arg0, %c0_i32 : i32, i32
  }
  func.func @transform_2(%arg0: i32, %arg1: i32) -> (i32, i32) {
    %c0_i32 = arith.constant 0 : i32
    %c0_i32_0 = arith.constant 0 : i32
    return %c0_i32, %arg0 : i32, i32
  }
  func.func @transform_3(%arg0: i32, %arg1: i32) -> (i32, i32) {
    %c0_i32 = arith.constant 0 : i32
    return %arg1, %arg0 : i32, i32
  }
}

</mosaic_0001>

<llo_original>
// kernel: patch_embed.1
$region0: #{patch_embed.1}
  #allocation0 [shape = 'u32[]', space=smem, size = 0x4, offset = 0x4, fixed_abs, tag = 'smem constant byte address 0x4 - core index']
  #allocation1 [shape = 'u32[144,128]{1,0:T(1,128)}', space=vmem, size = 0x12000, scoped, tag = 'internal scratch']
  %s0 = inlined_call_operand.vmem [shape: f32[32,64], index: 0, kind: input, shape index: {}]
  %s1 = inlined_call_operand.vmem [shape: f32[128,64], index: 1, kind: input, shape index: {}]
  %s2 = inlined_call_operand.vmem [shape: f32[1,128], index: 2, kind: input, shape index: {}]
  %s3 = inlined_call_operand.hbm [shape: f32[32,128], index: 3, kind: output, shape index: {}]
  %s4 = sld [smem:[#allocation0]]
  $region22: #{patch_embed.1} parent=0
    _
  %s6 = ssub.s32 1, %s4
  %s7 = scalar_select 0, %s6, %s4
  $region1: #{patch_embed.1} parent=0
    #allocation2 [shape = 'u8[16384]{0}', space=vmem, size = 0x4000, scoped, tag = 'output window, operand 0, single buffered']
    #allocation3 [shape = 's32[1]{0}', space=sflag, size = 0x4, scoped, tag = 'scoped memory for patch_embed.1']
    %8 = vsyncpa [#allocation3], 0
    // Predicated region
    $region2: #{patch_embed.1} parent=1 // pred_check
      _
    $region3: #{patch_embed.1} parent=1 // pred_check_branch
      %10 = sbr.rel (0) target = $region5
    $region4: #{patch_embed.1} parent=1 // pred_region
      _
    $region5: #{patch_embed.1} parent=1 // pred_fallthru
      _
    // Predicated region
    $region6: #{patch_embed.1} parent=1 // pred_check
      _
    $region7: #{patch_embed.1} parent=1 // pred_check_branch
      %12 = sbr.rel (0) target = $region9
    $region8: #{patch_embed.1} parent=1 // pred_region
      _
    $region9: #{patch_embed.1} parent=1 // pred_fallthru
      _
    // Predicated region
    $region10: #{patch_embed.1} parent=1 // pred_check
      _
    $region11: #{patch_embed.1} parent=1 // pred_check_branch
      %14 = sbr.rel (0) target = $region13
    $region12: #{patch_embed.1} parent=1 // pred_region
      _
    $region13: #{patch_embed.1} parent=1 // pred_fallthru
      _
    %v15 = vld [vmem:[%s0] sm:$0xff]
    %v16 = vld [vmem:[%s0 + $0x8] sm:$0xff]
    %v17 = vld [vmem:[%s0 + $0x10] sm:$0xff]
    %v18 = vld [vmem:[%s0 + $0x18] sm:$0xff]
    %v19 = vld [vmem:[%s1] sm:$0xff]
    %v20 = vld [vmem:[%s1 + $0x8] sm:$0xff]
    %v21 = vld [vmem:[%s1 + $0x10] sm:$0xff]
    %v22 = vld [vmem:[%s1 + $0x18] sm:$0xff]
    %v23 = vld [vmem:[%s1 + $0x20] sm:$0xff]
    %v24 = vld [vmem:[%s1 + $0x28] sm:$0xff]
    %v25 = vld [vmem:[%s1 + $0x30] sm:$0xff]
    %v26 = vld [vmem:[%s1 + $0x38] sm:$0xff]
    %v27 = vld [vmem:[%s1 + $0x40] sm:$0xff]
    %v28 = vld [vmem:[%s1 + $0x48] sm:$0xff]
    %v29 = vld [vmem:[%s1 + $0x50] sm:$0xff]
    %v30 = vld [vmem:[%s1 + $0x58] sm:$0xff]
    %v31 = vld [vmem:[%s1 + $0x60] sm:$0xff]
    %v32 = vld [vmem:[%s1 + $0x68] sm:$0xff]
    %v33 = vld [vmem:[%s1 + $0x70] sm:$0xff]
    %v34 = vld [vmem:[%s1 + $0x78] sm:$0xff]
    %v35 = vld [vmem:[%s2] sm:$0x1]
    %v37 = vlaneseq
    %v38 = vshrl.u32 %v37, 7
    %v39 = vsub.s32 0, %v38
    %v40 = vrot.slane %v35, %v39
    %vm42 = vcmask 523264
    %v44 = vsel %vm42, %v15, 0
    %v47 = vsel %vm42, %v16, 0
    %v50 = vsel %vm42, %v17, 0
    %v53 = vsel %vm42, %v18, 0
    %v56 = vsel %vm42, %v19, 0
    %v59 = vsel %vm42, %v20, 0
    %v62 = vsel %vm42, %v21, 0
    %v65 = vsel %vm42, %v22, 0
    %v68 = vsel %vm42, %v23, 0
    %v71 = vsel %vm42, %v24, 0
    %v74 = vsel %vm42, %v25, 0
    %v77 = vsel %vm42, %v26, 0
    %v80 = vsel %vm42, %v27, 0
    %v83 = vsel %vm42, %v28, 0
    %v86 = vsel %vm42, %v29, 0
    %v89 = vsel %vm42, %v30, 0
    %v92 = vsel %vm42, %v31, 0
    %v95 = vsel %vm42, %v32, 0
    %v98 = vsel %vm42, %v33, 0
    %v101 = vsel %vm42, %v34, 0
    %103 = vmatprep.subr.mxu0 0.0
    %104 = vmatpush1.xpose.msra.mxu0 %v56
    %105 = vmatprep.subr.mxu0 0.0
    %106 = vmatpush1.xpose.msra.mxu0 %v59
    %107 = vmatprep.subr.mxu0 0.0
    %108 = vmatpush1.xpose.msra.mxu0 %v62
    %109 = vmatprep.subr.mxu0 0.0
    %110 = vmatpush1.xpose.msra.mxu0 %v65
    %111 = vmatprep.subr.mxu0 0.0
    %112 = vmatpush1.xpose.msra.mxu0 %v68
    %113 = vmatprep.subr.mxu0 0.0
    %114 = vmatpush1.xpose.msra.mxu0 %v71
    %115 = vmatprep.subr.mxu0 0.0
    %116 = vmatpush1.xpose.msra.mxu0 %v74
    %117 = vmatprep.subr.mxu0 0.0
    %118 = vmatpush1.xpose.msra.mxu0 %v77
    %119 = vmatprep.subr.mxu0 0.0
    %120 = vmatpush1.xpose.msra.mxu0 %v80
    %121 = vmatprep.subr.mxu0 0.0
    %122 = vmatpush1.xpose.msra.mxu0 %v83
    %123 = vmatprep.subr.mxu0 0.0
    %124 = vmatpush1.xpose.msra.mxu0 %v86
    %125 = vmatprep.subr.mxu0 0.0
    %126 = vmatpush1.xpose.msra.mxu0 %v89
    %127 = vmatprep.subr.mxu0 0.0
    %128 = vmatpush1.xpose.msra.mxu0 %v92
    %129 = vmatprep.subr.mxu0 0.0
    %130 = vmatpush1.xpose.msra.mxu0 %v95
    %131 = vmatprep.subr.mxu0 0.0
    %132 = vmatpush1.xpose.msra.mxu0 %v98
    %133 = vmatprep.subr.mxu0 0.0
    %134 = vmatpush1.xpose.msra.mxu0 %v101
    %135 = vmatprep.subr.mxu0 0.0
    %136 = vmatpush1.xpose.msra.mxu0 0.0
    %137 = vmatprep.subr.mxu0 0.0
    %138 = vmatpush1.xpose.msra.mxu0 0.0
    %139 = vmatprep.subr.mxu0 0.0
    %140 = vmatpush1.xpose.msra.mxu0 0.0
    %141 = vmatprep.subr.mxu0 0.0
    %142 = vmatpush1.xpose.msra.mxu0 0.0
    %143 = vmatprep.subr.mxu0 0.0
    %144 = vmatpush1.xpose.msra.mxu0 0.0
    %145 = vmatprep.subr.mxu0 0.0
    %146 = vmatpush1.xpose.msra.mxu0 0.0
    %147 = vmatprep.subr.mxu0 0.0
    %148 = vmatpush1.xpose.msra.mxu0 0.0
    %149 = vmatprep.subr.mxu0 0.0
    %150 = vmatpush1.xpose.msra.mxu0 0.0
    %151 = vmatprep.subr.mxu0 0.0
    %152 = vmatpush1.xpose.msra.mxu0 0.0
    %153 = vmatprep.subr.mxu0 0.0
    %154 = vmatpush1.xpose.msra.mxu0 0.0
    %155 = vmatprep.subr.mxu0 0.0
    %156 = vmatpush1.xpose.msra.mxu0 0.0
    %157 = vmatprep.subr.mxu0 0.0
    %158 = vmatpush1.xpose.msra.mxu0 0.0
    %159 = vmatprep.subr.mxu0 0.0
    %160 = vmatpush1.xpose.msra.mxu0 0.0
    %161 = vmatprep.subr.mxu0 0.0
    %162 = vmatpush1.xpose.msra.mxu0 0.0
    %163 = vmatprep.subr.mxu0 0.0
    %164 = vmatpush1.xpose.msra.mxu0 0.0
    %165 = vmatprep.subr.mxu0 0.0
    %166 = vmatpush1.xpose.msra.mxu0 0.0
    %167 = vmatprep.mubr.f32.mxu0 0.0
    %168 = vmatmul.mubr.f32.gmra.mrb[0].mxu0 %v44
    %v169 = vpop.f32.mrb[0].mxu0
    %v170 = vadd.f32 %v40, %v169
    %v171 = vpop.f32.mrb[0].mxu0
    %172 = vmatprep.mubr.f32.mxu0 0.0
    %173 = vmatmul.mubr.f32.gmra.mrb[0].mxu0 %v47
    %v174 = vpop.f32.mrb[0].mxu0
    %v175 = vadd.f32 %v40, %v174
    %v176 = vpop.f32.mrb[0].mxu0
    %177 = vmatprep.mubr.f32.mxu0 0.0
    %178 = vmatmul.mubr.f32.gmra.mrb[0].mxu0 %v50
    %v179 = vpop.f32.mrb[0].mxu0
    %v180 = vadd.f32 %v40, %v179
    %v181 = vpop.f32.mrb[0].mxu0
    %182 = vmatprep.mubr.f32.mxu0 0.0
    %183 = vmatmul.mubr.f32.gmra.mrb[0].mxu0 %v53
    %v184 = vpop.f32.mrb[0].mxu0
    %v185 = vadd.f32 %v40, %v184
    %v186 = vpop.f32.mrb[0].mxu0
    %187 = vdwg.mxu0
    %188 = vst [vmem:[#allocation2] sm:$0xff] %v170
    %189 = vst [vmem:[#allocation2 + $0x8] sm:$0xff] %v175
    %190 = vst [vmem:[#allocation2 + $0x10] sm:$0xff] %v180
    %191 = vst [vmem:[#allocation2 + $0x18] sm:$0xff] %v185
    // Predicated region
    $region14: #{patch_embed.1} parent=1 // pred_check
      _
    $region15: #{patch_embed.1} parent=1 // pred_check_branch
      %193 = sbr.rel (0) target = $region17
    $region16: #{patch_embed.1} parent=1 // pred_region
      %s195 = ssub.s32 512, 512
      %196 = vsyncadd [#allocation3], %s195
      %s197 = sshll.u32 [#allocation2], 4
      %s198 = int_to_ptr.vmem [resolvable:$true] %s197
      %203 = dma.vmem_to_hbm [thread:$0]  %s198, 512, %s3, [#allocation3], 128, 128, 8
    $region17: #{patch_embed.1} parent=1 // pred_fallthru
      _
    // Predicated region
    $region18: #{patch_embed.1} parent=1 // pred_check
      _
    $region19: #{patch_embed.1} parent=1 // pred_check_branch
      %205 = sbr.rel (0) target = $region21
    $region20: #{patch_embed.1} parent=1 // pred_region
      %206 = dma.done [#allocation3], 512
    $region21: #{patch_embed.1} parent=1 // pred_fallthru
      _
    %207 = vsyncpa [#allocation3], 1

</llo_original>
